<compile_context>
chip_gen: v7x
topology: tpu7x:2x2x1
jax: 0.10.0
libtpu: 0.0.40
codegen_flags: <defaults>
</compile_context>

<pallas_src>
import functools

import jax
import jax.numpy as jnp
from jax import lax
from jax.experimental import pallas as pl
from jax.experimental.pallas import tpu as pltpu


def _alif_chunk_kernel(x_ref, alpha_ref, ro_ref,
                       seq_ref, mem_ref, eta_ref,
                       spike_state,
                       *, b_0, beta, r_m, dt, tc_steps, unroll):
    t = pl.program_id(2)
    dtype = mem_ref.dtype

    # First time-chunk of each (batch, feature) tile: init_neuro_states
    #   mem = 0, spike = 0, eta = b_0
    @pl.when(t == 0)
    def _():
        spike_state[...] = jnp.zeros_like(spike_state)
        mem_ref[...] = jnp.zeros_like(mem_ref)
        eta_ref[...] = jnp.full(eta_ref.shape, b_0, dtype=dtype)

    # Hoisted once per time-chunk (EUP sigmoid on fp32 params), not per timestep.
    alpha = jax.nn.sigmoid(alpha_ref[...]).astype(dtype)       # [1, td]
    ro = jax.nn.sigmoid(ro_ref[...]).astype(dtype)              # [1, td]
    one_m_ro = 1.0 - ro
    in_gain = 1.0 - alpha                                       # (1 - alpha) * R_m
    if r_m != 1.0:
        in_gain = in_gain * r_m

    spike = spike_state[...]
    mem = mem_ref[...]
    eta = eta_ref[...]

    def step(i, carry):
        spike, mem, eta = carry
        x = x_ref[i]                                            # (tb, td)
        # eta = ro * eta + (1 - ro) * spike
        eta = ro * eta + one_m_ro * spike
        theta = b_0 + beta * eta
        # mem = mem*alpha + (1-alpha)*R_m*x - theta*spike*dt   (literal grouping)
        dec = theta * spike
        if dt != 1.0:
            dec = dec * dt
        mem = mem * alpha + in_gain * x - dec
        # act_fun_adp forward: heaviside(mem - theta)
        spike = ((mem - theta) > 0.0).astype(dtype)
        seq_ref[i] = spike.astype(seq_ref.dtype)
        return spike, mem, eta

    spike, mem, eta = lax.fori_loop(0, tc_steps, step, (spike, mem, eta),
                                    unroll=unroll)

    # State written back once per chunk (stays VMEM-resident across the time axis).
    spike_state[...] = spike
    mem_ref[...] = mem
    eta_ref[...] = eta


def _largest_divisor(n, step, cap):
    """Largest multiple of `step` that divides `n` and is <= cap (None if none)."""
    cap = min(cap, n)
    best = None
    d = step
    while d <= cap:
        if n % d == 0:
            best = d
        d += step
    return best


def _choose_tiles(T, B, D, itemsize, *,
                  state_tile_bytes=2 << 20, time_chunk_bytes=4 << 20):
    """Pick (batch_tile, feature_tile, time_chunk) honoring the (8,128) tiling rule."""
    # Feature (lane) tile: multiple of 128 dividing D, else full D.
    if D % 128 == 0:
        cap_td = max(128, (state_tile_bytes // (8 * itemsize)) // 128 * 128)
        td = _largest_divisor(D, 128, cap_td) or D
    else:
        td = D  # full extent allowed; may fall back to masked stores
    # Batch (sublane) tile: multiple of 8 dividing B, else full B.
    if B % 8 == 0:
        cap_tb = max(8, (state_tile_bytes // (td * itemsize)) // 8 * 8)
        tb = _largest_divisor(B, 8, cap_tb) or B
        # v7x megacore: prefer >= 2 parallel tiles when the batch allows it.
        if (B // tb) * (D // td) < 2:
            tb_half = _largest_divisor(B, 8, max(8, B // 2)) if B >= 16 else None
            if tb_half is not None and B // tb_half >= 2:
                tb = tb_half
    else:
        tb = B
        # Full-B tile forced by the sublane rule: shrink td if the state tile is large.
        if D % 128 == 0 and tb * td * itemsize > 2 * state_tile_bytes:
            cap_td = max(128, (2 * state_tile_bytes // (tb * itemsize)) // 128 * 128)
            td = _largest_divisor(D, 128, cap_td) or td
    # Time chunk: amortize per-grid-step overhead with MiB-scale streaming DMAs.
    cap_tc = max(1, time_chunk_bytes // (tb * td * itemsize))
    tc = _largest_divisor(T, 1, cap_tc) or 1
    return tb, td, tc


def alif_forward(xs, alpha_raw, ro_raw, *, b_0=1.6, beta=0.184, r_m=1.0, dt=1.0,
                 spike_dtype=None):
    """Run T ALIF timesteps (step 0 initializes neuron state, matching forward()).

    xs: [T, B, D] input sequence; alpha_raw, ro_raw: [D] raw per-feature parameters.
    Returns (spikes [T, B, D], spike_T [B, D], mem_T [B, D], eta_T [B, D]).
    """
    T, B, D = xs.shape
    dtype = xs.dtype
    out_spike_dtype = dtype if spike_dtype is None else jnp.dtype(spike_dtype)
    # Parameters stay fp32 through the sigmoid (matches PyTorch's fp32 parameter path).
    alpha2d = alpha_raw.reshape(1, D).astype(jnp.float32)
    ro2d = ro_raw.reshape(1, D).astype(jnp.float32)

    itemsize = jnp.dtype(dtype).itemsize
    tb, td, tc = _choose_tiles(T, B, D, itemsize)
    assert B % tb == 0 and D % td == 0 and T % tc == 0
    grid = (B // tb, D // td, T // tc)

    kernel = functools.partial(
        _alif_chunk_kernel, b_0=float(b_0), beta=float(beta), r_m=float(r_m),
        dt=float(dt), tc_steps=tc, unroll=min(tc, 8))

    x_spec = pl.BlockSpec((tc, tb, td), lambda b, d, t: (t, b, d))      # streams per chunk
    param_spec = pl.BlockSpec((1, td), lambda b, d, t: (0, d))          # resident
    seq_spec = pl.BlockSpec((tc, tb, td), lambda b, d, t: (t, b, d))    # streams per chunk
    state_spec = pl.BlockSpec((tb, td), lambda b, d, t: (b, d))         # ignores t -> resident

    out_shapes = (
        jax.ShapeDtypeStruct((T, B, D), out_spike_dtype),  # per-step spike sequence
        jax.ShapeDtypeStruct((B, D), dtype),               # final mem
        jax.ShapeDtypeStruct((B, D), dtype),               # final eta
    )
    spikes, mem_T, eta_T = pl.pallas_call(
        kernel,
        grid=grid,
        in_specs=[x_spec, param_spec, param_spec],
        out_specs=(seq_spec, state_spec, state_spec),
        out_shape=out_shapes,
        scratch_shapes=[pltpu.VMEM((tb, td), dtype)],       # spike state across chunks
        compiler_params=pltpu.CompilerParams(
            dimension_semantics=("parallel", "parallel", "arbitrary"),
            vmem_limit_bytes=48 << 20),
    )(xs, alpha2d, ro2d)

    spike_T = spikes[T - 1].astype(dtype)  # final spike = last sequence element
    return spikes, spike_T, mem_T, eta_T


def alif_reference(xs, alpha_raw, ro_raw, *, b_0=1.6, beta=0.184, r_m=1.0, dt=1.0):
    """Plain-JAX reference using the literal PyTorch expressions."""
    T, B, D = xs.shape
    dtype = xs.dtype
    alpha = jax.nn.sigmoid(alpha_raw.astype(jnp.float32)).astype(dtype)[None, :]
    ro = jax.nn.sigmoid(ro_raw.astype(jnp.float32)).astype(dtype)[None, :]
    spike = jnp.zeros((B, D), dtype)
    mem = jnp.zeros((B, D), dtype)
    eta = jnp.ones((B, D), dtype) * b_0
    spikes = []
    for t in range(T):
        x = xs[t]
        eta = ro * eta + (1 - ro) * spike
        theta = b_0 + beta * eta
        mem = mem * alpha + (1 - alpha) * r_m * x - theta * spike * dt
        spike = (mem - theta > 0).astype(dtype)
        spikes.append(spike)
    return jnp.stack(spikes), spike, mem, eta


if __name__ == "__main__":
    T, B, D = 8, 8, 128   # timesteps, batch (multiple of 8 sublanes), input_dim (lane-dense)
    b_0 = 1.6
    key = jax.random.PRNGKey(0)
    kx, ka, kr = jax.random.split(key, 3)

    # PyTorch init is zeros*(-log(1)) = 0; use small randoms so sigmoid(.) != 0.5 exactly.
    alpha_raw = 0.1 * jax.random.normal(ka, (D,), dtype=jnp.float32)
    ro_raw = 0.1 * jax.random.normal(kr, (D,), dtype=jnp.float32)
    xs = jax.random.normal(kx, (T, B, D), dtype=jnp.float32) * 3.0

    spikes, spike_T, mem_T, eta_T = alif_forward(xs, alpha_raw, ro_raw, b_0=b_0)
    jax.block_until_ready((spikes, spike_T, mem_T, eta_T))

    spikes_r, spike_r, mem_r, eta_r = alif_reference(xs, alpha_raw, ro_raw, b_0=b_0)

    assert jnp.allclose(mem_T, mem_r, atol=1e-5), "mem mismatch vs reference"
    assert jnp.allclose(eta_T, eta_r, atol=1e-5), "eta mismatch vs reference"
    assert jnp.allclose(spike_T, spike_r, atol=1e-5), "spike mismatch vs reference"
    assert jnp.allclose(spikes, spikes_r, atol=1e-5), "spike sequence mismatch vs reference"

    # TODO(synk): liquid=True / no_spiking=True branches (Linear-layer variants) and the
    # surrogate-gradient backward of act_fun_adp are not implemented; this kernel covers
    # the default non-liquid spiking forward path only.

    print("KERNEL_OK")
</pallas_src>

<mosaic_0001>
module attributes {stable_mosaic.version = 11 : i64} {
  func.func @_alif_chunk_kernel(%arg0: i32, %arg1: i32, %arg2: i32, %arg3: memref<8x8x128xf32, #tpu.memory_space<vmem>>, %arg4: memref<1x128xf32, #tpu.memory_space<vmem>>, %arg5: memref<1x128xf32, #tpu.memory_space<vmem>>, %arg6: memref<8x8x128xf32, #tpu.memory_space<vmem>>, %arg7: memref<8x128xf32, #tpu.memory_space<vmem>>, %arg8: memref<8x128xf32, #tpu.memory_space<vmem>>, %arg9: memref<8x128xf32, #tpu.memory_space<vmem>>) attributes {dimension_semantics = [#tpu.dimension_semantics<parallel>, #tpu.dimension_semantics<parallel>, #tpu.dimension_semantics<arbitrary>], iteration_bounds = array<i64: 1, 1, 1>, scalar_prefetch = 0 : i64, scratch_operands = 1 : i64, tpu.core_type = #tpu.core_type<tc>, window_params = [{transform_indices = @transform_0, window_bounds = array<i64: 8, 8, 128>}, {transform_indices = @transform_1, window_bounds = array<i64: 1, 128>}, {transform_indices = @transform_2, window_bounds = array<i64: 1, 128>}, {transform_indices = @transform_3, window_bounds = array<i64: 8, 8, 128>}, {transform_indices = @transform_4, window_bounds = array<i64: 8, 128>}, {transform_indices = @transform_5, window_bounds = array<i64: 8, 128>}]} {
    %c0_i32 = arith.constant 0 : i32
    %0 = arith.cmpi eq, %arg2, %c0_i32 : i32
    %1 = arith.extui %0 : i1 to i32
    %c0_i32_0 = arith.constant 0 : i32
    %2 = arith.cmpi ne, %1, %c0_i32_0 : i32
    scf.if %2 {
      %cst_76 = arith.constant 0.000000e+00 : f32
      %249 = vector.broadcast %cst_76 : f32 to vector<8x128xf32>
      %c0_77 = arith.constant 0 : index
      %c0_78 = arith.constant 0 : index
      %250 = vector.load %arg9[%c0_77, %c0_78] : memref<8x128xf32, #tpu.memory_space<vmem>>, vector<8x128xf32>
      tpu.vector_store %arg9[%c0_77, %c0_78], %249 {strides = array<i32>} : memref<8x128xf32, #tpu.memory_space<vmem>>, vector<8x128xf32>,
      %cst_79 = arith.constant 0.000000e+00 : f32
      %251 = vector.broadcast %cst_79 : f32 to vector<8x128xf32>
      %c0_80 = arith.constant 0 : index
      %c0_81 = arith.constant 0 : index
      %252 = vector.load %arg7[%c0_80, %c0_81] : memref<8x128xf32, #tpu.memory_space<vmem>>, vector<8x128xf32>
      tpu.vector_store %arg7[%c0_80, %c0_81], %251 {strides = array<i32>} : memref<8x128xf32, #tpu.memory_space<vmem>>, vector<8x128xf32>,
      %cst_82 = arith.constant 1.600000e+00 : f32
      %253 = vector.broadcast %cst_82 : f32 to vector<8x128xf32>
      %c0_83 = arith.constant 0 : index
      %c0_84 = arith.constant 0 : index
      %254 = vector.load %arg8[%c0_83, %c0_84] : memref<8x128xf32, #tpu.memory_space<vmem>>, vector<8x128xf32>
      tpu.vector_store %arg8[%c0_83, %c0_84], %253 {strides = array<i32>} : memref<8x128xf32, #tpu.memory_space<vmem>>, vector<8x128xf32>,
    } else {
    }
    %c0 = arith.constant 0 : index
    %c0_1 = arith.constant 0 : index
    %3 = vector.load %arg4[%c0, %c0_1] : memref<1x128xf32, #tpu.memory_space<vmem>>, vector<1x128xf32>
    %4 = arith.negf %3 : vector<1x128xf32>
    %5 = math.exp %4 : vector<1x128xf32>
    %cst = arith.constant 1.000000e+00 : f32
    %6 = vector.broadcast %cst : f32 to vector<1x128xf32>
    %7 = arith.addf %6, %5 : vector<1x128xf32>
    %8 = arith.divf %6, %7 : vector<1x128xf32>
    %c0_2 = arith.constant 0 : index
    %c0_3 = arith.constant 0 : index
    %9 = vector.load %arg5[%c0_2, %c0_3] : memref<1x128xf32, #tpu.memory_space<vmem>>, vector<1x128xf32>
    %10 = arith.negf %9 : vector<1x128xf32>
    %11 = math.exp %10 : vector<1x128xf32>
    %cst_4 = arith.constant 1.000000e+00 : f32
    %12 = vector.broadcast %cst_4 : f32 to vector<1x128xf32>
    %13 = arith.addf %12, %11 : vector<1x128xf32>
    %14 = arith.divf %12, %13 : vector<1x128xf32>
    %cst_5 = arith.constant 1.000000e+00 : f32
    %15 = vector.broadcast %cst_5 : f32 to vector<1x128xf32>
    %16 = arith.subf %15, %14 : vector<1x128xf32>
    %cst_6 = arith.constant 1.000000e+00 : f32
    %17 = vector.broadcast %cst_6 : f32 to vector<1x128xf32>
    %18 = arith.subf %17, %8 : vector<1x128xf32>
    %c0_7 = arith.constant 0 : index
    %c0_8 = arith.constant 0 : index
    %19 = vector.load %arg9[%c0_7, %c0_8] : memref<8x128xf32, #tpu.memory_space<vmem>>, vector<8x128xf32>
    %c0_9 = arith.constant 0 : index
    %c0_10 = arith.constant 0 : index
    %20 = vector.load %arg7[%c0_9, %c0_10] : memref<8x128xf32, #tpu.memory_space<vmem>>, vector<8x128xf32>
    %c0_11 = arith.constant 0 : index
    %c0_12 = arith.constant 0 : index
    %21 = vector.load %arg8[%c0_11, %c0_12] : memref<8x128xf32, #tpu.memory_space<vmem>>, vector<8x128xf32>
    %c0_i32_13 = arith.constant 0 : i32
    %22 = arith.index_cast %c0_i32_13 : i32 to index
    %c0_14 = arith.constant 0 : index
    %c0_15 = arith.constant 0 : index
    %23 = vector.load %arg3[%22, %c0_14, %c0_15] : memref<8x8x128xf32, #tpu.memory_space<vmem>>, vector<1x8x128xf32>
    %24 = vector.shape_cast %23 : vector<1x8x128xf32> to vector<8x128xf32>
    %25 = vector.broadcast %14 : vector<1x128xf32> to vector<8x128xf32>
    %26 = arith.mulf %25, %21 : vector<8x128xf32>
    %27 = vector.broadcast %16 : vector<1x128xf32> to vector<8x128xf32>
    %28 = arith.mulf %27, %19 : vector<8x128xf32>
    %29 = arith.addf %26, %28 : vector<8x128xf32>
    %cst_16 = arith.constant 1.840000e-01 : f32
    %30 = vector.broadcast %cst_16 : f32 to vector<8x128xf32>
    %31 = arith.mulf %30, %29 : vector<8x128xf32>
    %cst_17 = arith.constant 1.600000e+00 : f32
    %32 = vector.broadcast %cst_17 : f32 to vector<8x128xf32>
    %33 = arith.addf %32, %31 : vector<8x128xf32>
    %34 = arith.mulf %33, %19 : vector<8x128xf32>
    %35 = vector.broadcast %8 : vector<1x128xf32> to vector<8x128xf32>
    %36 = arith.mulf %20, %35 : vector<8x128xf32>
    %37 = vector.broadcast %18 : vector<1x128xf32> to vector<8x128xf32>
    %38 = arith.mulf %37, %24 : vector<8x128xf32>
    %39 = arith.addf %36, %38 : vector<8x128xf32>
    %40 = arith.subf %39, %34 : vector<8x128xf32>
    %41 = arith.subf %40, %33 : vector<8x128xf32>
    %cst_18 = arith.constant 0.000000e+00 : f32
    %42 = vector.broadcast %cst_18 : f32 to vector<8x128xf32>
    %43 = arith.cmpf ogt, %41, %42 : vector<8x128xf32>
    %44 = arith.extui %43 : vector<8x128xi1> to vector<8x128xi32>
    %45 = arith.sitofp %44 : vector<8x128xi32> to vector<8x128xf32>
    %46 = arith.index_cast %c0_i32_13 : i32 to index
    %c0_19 = arith.constant 0 : index
    %c0_20 = arith.constant 0 : index
    %47 = vector.load %arg6[%46, %c0_19, %c0_20] : memref<8x8x128xf32, #tpu.memory_space<vmem>>, vector<1x8x128xf32>
    %48 = vector.shape_cast %47 : vector<1x8x128xf32> to vector<8x128xf32>
    %49 = vector.shape_cast %45 : vector<8x128xf32> to vector<1x8x128xf32>
    tpu.vector_store %arg6[%46, %c0_19, %c0_20], %49 {strides = array<i32>} : memref<8x8x128xf32, #tpu.memory_space<vmem>>, vector<1x8x128xf32>,
    %c1_i32 = arith.constant 1 : i32
    %50 = arith.index_cast %c1_i32 : i32 to index
    %c0_21 = arith.constant 0 : index
    %c0_22 = arith.constant 0 : index
    %51 = vector.load %arg3[%50, %c0_21, %c0_22] : memref<8x8x128xf32, #tpu.memory_space<vmem>>, vector<1x8x128xf32>
    %52 = vector.shape_cast %51 : vector<1x8x128xf32> to vector<8x128xf32>
    %53 = vector.broadcast %14 : vector<1x128xf32> to vector<8x128xf32>
    %54 = arith.mulf %53, %29 : vector<8x128xf32>
    %55 = vector.broadcast %16 : vector<1x128xf32> to vector<8x128xf32>
    %56 = arith.mulf %55, %45 : vector<8x128xf32>
    %57 = arith.addf %54, %56 : vector<8x128xf32>
    %cst_23 = arith.constant 1.840000e-01 : f32
    %58 = vector.broadcast %cst_23 : f32 to vector<8x128xf32>
    %59 = arith.mulf %58, %57 : vector<8x128xf32>
    %cst_24 = arith.constant 1.600000e+00 : f32
    %60 = vector.broadcast %cst_24 : f32 to vector<8x128xf32>
    %61 = arith.addf %60, %59 : vector<8x128xf32>
    %62 = arith.mulf %61, %45 : vector<8x128xf32>
    %63 = vector.broadcast %8 : vector<1x128xf32> to vector<8x128xf32>
    %64 = arith.mulf %40, %63 : vector<8x128xf32>
    %65 = vector.broadcast %18 : vector<1x128xf32> to vector<8x128xf32>
    %66 = arith.mulf %65, %52 : vector<8x128xf32>
    %67 = arith.addf %64, %66 : vector<8x128xf32>
    %68 = arith.subf %67, %62 : vector<8x128xf32>
    %69 = arith.subf %68, %61 : vector<8x128xf32>
    %cst_25 = arith.constant 0.000000e+00 : f32
    %70 = vector.broadcast %cst_25 : f32 to vector<8x128xf32>
    %71 = arith.cmpf ogt, %69, %70 : vector<8x128xf32>
    %72 = arith.extui %71 : vector<8x128xi1> to vector<8x128xi32>
    %73 = arith.sitofp %72 : vector<8x128xi32> to vector<8x128xf32>
    %74 = arith.index_cast %c1_i32 : i32 to index
    %c0_26 = arith.constant 0 : index
    %c0_27 = arith.constant 0 : index
    %75 = vector.load %arg6[%74, %c0_26, %c0_27] : memref<8x8x128xf32, #tpu.memory_space<vmem>>, vector<1x8x128xf32>
    %76 = vector.shape_cast %75 : vector<1x8x128xf32> to vector<8x128xf32>
    %77 = vector.shape_cast %73 : vector<8x128xf32> to vector<1x8x128xf32>
    tpu.vector_store %arg6[%74, %c0_26, %c0_27], %77 {strides = array<i32>} : memref<8x8x128xf32, #tpu.memory_space<vmem>>, vector<1x8x128xf32>,
    %c2_i32 = arith.constant 2 : i32
    %78 = arith.index_cast %c2_i32 : i32 to index
    %c0_28 = arith.constant 0 : index
    %c0_29 = arith.constant 0 : index
    %79 = vector.load %arg3[%78, %c0_28, %c0_29] : memref<8x8x128xf32, #tpu.memory_space<vmem>>, vector<1x8x128xf32>
    %80 = vector.shape_cast %79 : vector<1x8x128xf32> to vector<8x128xf32>
    %81 = vector.broadcast %14 : vector<1x128xf32> to vector<8x128xf32>
    %82 = arith.mulf %81, %57 : vector<8x128xf32>
    %83 = vector.broadcast %16 : vector<1x128xf32> to vector<8x128xf32>
    %84 = arith.mulf %83, %73 : vector<8x128xf32>
    %85 = arith.addf %82, %84 : vector<8x128xf32>
    %cst_30 = arith.constant 1.840000e-01 : f32
    %86 = vector.broadcast %cst_30 : f32 to vector<8x128xf32>
    %87 = arith.mulf %86, %85 : vector<8x128xf32>
    %cst_31 = arith.constant 1.600000e+00 : f32
    %88 = vector.broadcast %cst_31 : f32 to vector<8x128xf32>
    %89 = arith.addf %88, %87 : vector<8x128xf32>
    %90 = arith.mulf %89, %73 : vector<8x128xf32>
    %91 = vector.broadcast %8 : vector<1x128xf32> to vector<8x128xf32>
    %92 = arith.mulf %68, %91 : vector<8x128xf32>
    %93 = vector.broadcast %18 : vector<1x128xf32> to vector<8x128xf32>
    %94 = arith.mulf %93, %80 : vector<8x128xf32>
    %95 = arith.addf %92, %94 : vector<8x128xf32>
    %96 = arith.subf %95, %90 : vector<8x128xf32>
    %97 = arith.subf %96, %89 : vector<8x128xf32>
    %cst_32 = arith.constant 0.000000e+00 : f32
    %98 = vector.broadcast %cst_32 : f32 to vector<8x128xf32>
    %99 = arith.cmpf ogt, %97, %98 : vector<8x128xf32>
    %100 = arith.extui %99 : vector<8x128xi1> to vector<8x128xi32>
    %101 = arith.sitofp %100 : vector<8x128xi32> to vector<8x128xf32>
    %102 = arith.index_cast %c2_i32 : i32 to index
    %c0_33 = arith.constant 0 : index
    %c0_34 = arith.constant 0 : index
    %103 = vector.load %arg6[%102, %c0_33, %c0_34] : memref<8x8x128xf32, #tpu.memory_space<vmem>>, vector<1x8x128xf32>
    %104 = vector.shape_cast %103 : vector<1x8x128xf32> to vector<8x128xf32>
    %105 = vector.shape_cast %101 : vector<8x128xf32> to vector<1x8x128xf32>
    tpu.vector_store %arg6[%102, %c0_33, %c0_34], %105 {strides = array<i32>} : memref<8x8x128xf32, #tpu.memory_space<vmem>>, vector<1x8x128xf32>,
    %c3_i32 = arith.constant 3 : i32
    %106 = arith.index_cast %c3_i32 : i32 to index
    %c0_35 = arith.constant 0 : index
    %c0_36 = arith.constant 0 : index
    %107 = vector.load %arg3[%106, %c0_35, %c0_36] : memref<8x8x128xf32, #tpu.memory_space<vmem>>, vector<1x8x128xf32>
    %108 = vector.shape_cast %107 : vector<1x8x128xf32> to vector<8x128xf32>
    %109 = vector.broadcast %14 : vector<1x128xf32> to vector<8x128xf32>
    %110 = arith.mulf %109, %85 : vector<8x128xf32>
    %111 = vector.broadcast %16 : vector<1x128xf32> to vector<8x128xf32>
    %112 = arith.mulf %111, %101 : vector<8x128xf32>
    %113 = arith.addf %110, %112 : vector<8x128xf32>
    %cst_37 = arith.constant 1.840000e-01 : f32
    %114 = vector.broadcast %cst_37 : f32 to vector<8x128xf32>
    %115 = arith.mulf %114, %113 : vector<8x128xf32>
    %cst_38 = arith.constant 1.600000e+00 : f32
    %116 = vector.broadcast %cst_38 : f32 to vector<8x128xf32>
    %117 = arith.addf %116, %115 : vector<8x128xf32>
    %118 = arith.mulf %117, %101 : vector<8x128xf32>
    %119 = vector.broadcast %8 : vector<1x128xf32> to vector<8x128xf32>
    %120 = arith.mulf %96, %119 : vector<8x128xf32>
    %121 = vector.broadcast %18 : vector<1x128xf32> to vector<8x128xf32>
    %122 = arith.mulf %121, %108 : vector<8x128xf32>
    %123 = arith.addf %120, %122 : vector<8x128xf32>
    %124 = arith.subf %123, %118 : vector<8x128xf32>
    %125 = arith.subf %124, %117 : vector<8x128xf32>
    %cst_39 = arith.constant 0.000000e+00 : f32
    %126 = vector.broadcast %cst_39 : f32 to vector<8x128xf32>
    %127 = arith.cmpf ogt, %125, %126 : vector<8x128xf32>
    %128 = arith.extui %127 : vector<8x128xi1> to vector<8x128xi32>
    %129 = arith.sitofp %128 : vector<8x128xi32> to vector<8x128xf32>
    %130 = arith.index_cast %c3_i32 : i32 to index
    %c0_40 = arith.constant 0 : index
    %c0_41 = arith.constant 0 : index
    %131 = vector.load %arg6[%130, %c0_40, %c0_41] : memref<8x8x128xf32, #tpu.memory_space<vmem>>, vector<1x8x128xf32>
    %132 = vector.shape_cast %131 : vector<1x8x128xf32> to vector<8x128xf32>
    %133 = vector.shape_cast %129 : vector<8x128xf32> to vector<1x8x128xf32>
    tpu.vector_store %arg6[%130, %c0_40, %c0_41], %133 {strides = array<i32>} : memref<8x8x128xf32, #tpu.memory_space<vmem>>, vector<1x8x128xf32>,
    %c4_i32 = arith.constant 4 : i32
    %134 = arith.index_cast %c4_i32 : i32 to index
    %c0_42 = arith.constant 0 : index
    %c0_43 = arith.constant 0 : index
    %135 = vector.load %arg3[%134, %c0_42, %c0_43] : memref<8x8x128xf32, #tpu.memory_space<vmem>>, vector<1x8x128xf32>
    %136 = vector.shape_cast %135 : vector<1x8x128xf32> to vector<8x128xf32>
    %137 = vector.broadcast %14 : vector<1x128xf32> to vector<8x128xf32>
    %138 = arith.mulf %137, %113 : vector<8x128xf32>
    %139 = vector.broadcast %16 : vector<1x128xf32> to vector<8x128xf32>
    %140 = arith.mulf %139, %129 : vector<8x128xf32>
    %141 = arith.addf %138, %140 : vector<8x128xf32>
    %cst_44 = arith.constant 1.840000e-01 : f32
    %142 = vector.broadcast %cst_44 : f32 to vector<8x128xf32>
    %143 = arith.mulf %142, %141 : vector<8x128xf32>
    %cst_45 = arith.constant 1.600000e+00 : f32
    %144 = vector.broadcast %cst_45 : f32 to vector<8x128xf32>
    %145 = arith.addf %144, %143 : vector<8x128xf32>
    %146 = arith.mulf %145, %129 : vector<8x128xf32>
    %147 = vector.broadcast %8 : vector<1x128xf32> to vector<8x128xf32>
    %148 = arith.mulf %124, %147 : vector<8x128xf32>
    %149 = vector.broadcast %18 : vector<1x128xf32> to vector<8x128xf32>
    %150 = arith.mulf %149, %136 : vector<8x128xf32>
    %151 = arith.addf %148, %150 : vector<8x128xf32>
    %152 = arith.subf %151, %146 : vector<8x128xf32>
    %153 = arith.subf %152, %145 : vector<8x128xf32>
    %cst_46 = arith.constant 0.000000e+00 : f32
    %154 = vector.broadcast %cst_46 : f32 to vector<8x128xf32>
    %155 = arith.cmpf ogt, %153, %154 : vector<8x128xf32>
    %156 = arith.extui %155 : vector<8x128xi1> to vector<8x128xi32>
    %157 = arith.sitofp %156 : vector<8x128xi32> to vector<8x128xf32>
    %158 = arith.index_cast %c4_i32 : i32 to index
    %c0_47 = arith.constant 0 : index
    %c0_48 = arith.constant 0 : index
    %159 = vector.load %arg6[%158, %c0_47, %c0_48] : memref<8x8x128xf32, #tpu.memory_space<vmem>>, vector<1x8x128xf32>
    %160 = vector.shape_cast %159 : vector<1x8x128xf32> to vector<8x128xf32>
    %161 = vector.shape_cast %157 : vector<8x128xf32> to vector<1x8x128xf32>
    tpu.vector_store %arg6[%158, %c0_47, %c0_48], %161 {strides = array<i32>} : memref<8x8x128xf32, #tpu.memory_space<vmem>>, vector<1x8x128xf32>,
    %c5_i32 = arith.constant 5 : i32
    %162 = arith.index_cast %c5_i32 : i32 to index
    %c0_49 = arith.constant 0 : index
    %c0_50 = arith.constant 0 : index
    %163 = vector.load %arg3[%162, %c0_49, %c0_50] : memref<8x8x128xf32, #tpu.memory_space<vmem>>, vector<1x8x128xf32>
    %164 = vector.shape_cast %163 : vector<1x8x128xf32> to vector<8x128xf32>
    %165 = vector.broadcast %14 : vector<1x128xf32> to vector<8x128xf32>
    %166 = arith.mulf %165, %141 : vector<8x128xf32>
    %167 = vector.broadcast %16 : vector<1x128xf32> to vector<8x128xf32>
    %168 = arith.mulf %167, %157 : vector<8x128xf32>
    %169 = arith.addf %166, %168 : vector<8x128xf32>
    %cst_51 = arith.constant 1.840000e-01 : f32
    %170 = vector.broadcast %cst_51 : f32 to vector<8x128xf32>
    %171 = arith.mulf %170, %169 : vector<8x128xf32>
    %cst_52 = arith.constant 1.600000e+00 : f32
    %172 = vector.broadcast %cst_52 : f32 to vector<8x128xf32>
    %173 = arith.addf %172, %171 : vector<8x128xf32>
    %174 = arith.mulf %173, %157 : vector<8x128xf32>
    %175 = vector.broadcast %8 : vector<1x128xf32> to vector<8x128xf32>
    %176 = arith.mulf %152, %175 : vector<8x128xf32>
    %177 = vector.broadcast %18 : vector<1x128xf32> to vector<8x128xf32>
    %178 = arith.mulf %177, %164 : vector<8x128xf32>
    %179 = arith.addf %176, %178 : vector<8x128xf32>
    %180 = arith.subf %179, %174 : vector<8x128xf32>
    %181 = arith.subf %180, %173 : vector<8x128xf32>
    %cst_53 = arith.constant 0.000000e+00 : f32
    %182 = vector.broadcast %cst_53 : f32 to vector<8x128xf32>
    %183 = arith.cmpf ogt, %181, %182 : vector<8x128xf32>
    %184 = arith.extui %183 : vector<8x128xi1> to vector<8x128xi32>
    %185 = arith.sitofp %184 : vector<8x128xi32> to vector<8x128xf32>
    %186 = arith.index_cast %c5_i32 : i32 to index
    %c0_54 = arith.constant 0 : index
    %c0_55 = arith.constant 0 : index
    %187 = vector.load %arg6[%186, %c0_54, %c0_55] : memref<8x8x128xf32, #tpu.memory_space<vmem>>, vector<1x8x128xf32>
    %188 = vector.shape_cast %187 : vector<1x8x128xf32> to vector<8x128xf32>
    %189 = vector.shape_cast %185 : vector<8x128xf32> to vector<1x8x128xf32>
    tpu.vector_store %arg6[%186, %c0_54, %c0_55], %189 {strides = array<i32>} : memref<8x8x128xf32, #tpu.memory_space<vmem>>, vector<1x8x128xf32>,
    %c6_i32 = arith.constant 6 : i32
    %190 = arith.index_cast %c6_i32 : i32 to index
    %c0_56 = arith.constant 0 : index
    %c0_57 = arith.constant 0 : index
    %191 = vector.load %arg3[%190, %c0_56, %c0_57] : memref<8x8x128xf32, #tpu.memory_space<vmem>>, vector<1x8x128xf32>
    %192 = vector.shape_cast %191 : vector<1x8x128xf32> to vector<8x128xf32>
    %193 = vector.broadcast %14 : vector<1x128xf32> to vector<8x128xf32>
    %194 = arith.mulf %193, %169 : vector<8x128xf32>
    %195 = vector.broadcast %16 : vector<1x128xf32> to vector<8x128xf32>
    %196 = arith.mulf %195, %185 : vector<8x128xf32>
    %197 = arith.addf %194, %196 : vector<8x128xf32>
    %cst_58 = arith.constant 1.840000e-01 : f32
    %198 = vector.broadcast %cst_58 : f32 to vector<8x128xf32>
    %199 = arith.mulf %198, %197 : vector<8x128xf32>
    %cst_59 = arith.constant 1.600000e+00 : f32
    %200 = vector.broadcast %cst_59 : f32 to vector<8x128xf32>
    %201 = arith.addf %200, %199 : vector<8x128xf32>
    %202 = arith.mulf %201, %185 : vector<8x128xf32>
    %203 = vector.broadcast %8 : vector<1x128xf32> to vector<8x128xf32>
    %204 = arith.mulf %180, %203 : vector<8x128xf32>
    %205 = vector.broadcast %18 : vector<1x128xf32> to vector<8x128xf32>
    %206 = arith.mulf %205, %192 : vector<8x128xf32>
    %207 = arith.addf %204, %206 : vector<8x128xf32>
    %208 = arith.subf %207, %202 : vector<8x128xf32>
    %209 = arith.subf %208, %201 : vector<8x128xf32>
    %cst_60 = arith.constant 0.000000e+00 : f32
    %210 = vector.broadcast %cst_60 : f32 to vector<8x128xf32>
    %211 = arith.cmpf ogt, %209, %210 : vector<8x128xf32>
    %212 = arith.extui %211 : vector<8x128xi1> to vector<8x128xi32>
    %213 = arith.sitofp %212 : vector<8x128xi32> to vector<8x128xf32>
    %214 = arith.index_cast %c6_i32 : i32 to index
    %c0_61 = arith.constant 0 : index
    %c0_62 = arith.constant 0 : index
    %215 = vector.load %arg6[%214, %c0_61, %c0_62] : memref<8x8x128xf32, #tpu.memory_space<vmem>>, vector<1x8x128xf32>
    %216 = vector.shape_cast %215 : vector<1x8x128xf32> to vector<8x128xf32>
    %217 = vector.shape_cast %213 : vector<8x128xf32> to vector<1x8x128xf32>
    tpu.vector_store %arg6[%214, %c0_61, %c0_62], %217 {strides = array<i32>} : memref<8x8x128xf32, #tpu.memory_space<vmem>>, vector<1x8x128xf32>,
    %c7_i32 = arith.constant 7 : i32
    %218 = arith.index_cast %c7_i32 : i32 to index
    %c0_63 = arith.constant 0 : index
    %c0_64 = arith.constant 0 : index
    %219 = vector.load %arg3[%218, %c0_63, %c0_64] : memref<8x8x128xf32, #tpu.memory_space<vmem>>, vector<1x8x128xf32>
    %220 = vector.shape_cast %219 : vector<1x8x128xf32> to vector<8x128xf32>
    %221 = vector.broadcast %14 : vector<1x128xf32> to vector<8x128xf32>
    %222 = arith.mulf %221, %197 : vector<8x128xf32>
    %223 = vector.broadcast %16 : vector<1x128xf32> to vector<8x128xf32>
    %224 = arith.mulf %223, %213 : vector<8x128xf32>
    %225 = arith.addf %222, %224 : vector<8x128xf32>
    %cst_65 = arith.constant 1.840000e-01 : f32
    %226 = vector.broadcast %cst_65 : f32 to vector<8x128xf32>
    %227 = arith.mulf %226, %225 : vector<8x128xf32>
    %cst_66 = arith.constant 1.600000e+00 : f32
    %228 = vector.broadcast %cst_66 : f32 to vector<8x128xf32>
    %229 = arith.addf %228, %227 : vector<8x128xf32>
    %230 = arith.mulf %229, %213 : vector<8x128xf32>
    %231 = vector.broadcast %8 : vector<1x128xf32> to vector<8x128xf32>
    %232 = arith.mulf %208, %231 : vector<8x128xf32>
    %233 = vector.broadcast %18 : vector<1x128xf32> to vector<8x128xf32>
    %234 = arith.mulf %233, %220 : vector<8x128xf32>
    %235 = arith.addf %232, %234 : vector<8x128xf32>
    %236 = arith.subf %235, %230 : vector<8x128xf32>
    %237 = arith.subf %236, %229 : vector<8x128xf32>
    %cst_67 = arith.constant 0.000000e+00 : f32
    %238 = vector.broadcast %cst_67 : f32 to vector<8x128xf32>
    %239 = arith.cmpf ogt, %237, %238 : vector<8x128xf32>
    %240 = arith.extui %239 : vector<8x128xi1> to vector<8x128xi32>
    %241 = arith.sitofp %240 : vector<8x128xi32> to vector<8x128xf32>
    %242 = arith.index_cast %c7_i32 : i32 to index
    %c0_68 = arith.constant 0 : index
    %c0_69 = arith.constant 0 : index
    %243 = vector.load %arg6[%242, %c0_68, %c0_69] : memref<8x8x128xf32, #tpu.memory_space<vmem>>, vector<1x8x128xf32>
    %244 = vector.shape_cast %243 : vector<1x8x128xf32> to vector<8x128xf32>
    %245 = vector.shape_cast %241 : vector<8x128xf32> to vector<1x8x128xf32>
    tpu.vector_store %arg6[%242, %c0_68, %c0_69], %245 {strides = array<i32>} : memref<8x8x128xf32, #tpu.memory_space<vmem>>, vector<1x8x128xf32>,
    %c8_i32 = arith.constant 8 : i32
    %c0_70 = arith.constant 0 : index
    %c0_71 = arith.constant 0 : index
    %246 = vector.load %arg9[%c0_70, %c0_71] : memref<8x128xf32, #tpu.memory_space<vmem>>, vector<8x128xf32>
    tpu.vector_store %arg9[%c0_70, %c0_71], %241 {strides = array<i32>} : memref<8x128xf32, #tpu.memory_space<vmem>>, vector<8x128xf32>,
    %c0_72 = arith.constant 0 : index
    %c0_73 = arith.constant 0 : index
    %247 = vector.load %arg7[%c0_72, %c0_73] : memref<8x128xf32, #tpu.memory_space<vmem>>, vector<8x128xf32>
    tpu.vector_store %arg7[%c0_72, %c0_73], %236 {strides = array<i32>} : memref<8x128xf32, #tpu.memory_space<vmem>>, vector<8x128xf32>,
    %c0_74 = arith.constant 0 : index
    %c0_75 = arith.constant 0 : index
    %248 = vector.load %arg8[%c0_74, %c0_75] : memref<8x128xf32, #tpu.memory_space<vmem>>, vector<8x128xf32>
    tpu.vector_store %arg8[%c0_74, %c0_75], %225 {strides = array<i32>} : memref<8x128xf32, #tpu.memory_space<vmem>>, vector<8x128xf32>,
    return
  }
  func.func @transform_0(%arg0: i32, %arg1: i32, %arg2: i32) -> (i32, i32, i32) {
    %c0_i32 = arith.constant 0 : i32
    return %arg2, %arg0, %arg1 : i32, i32, i32
  }
  func.func @transform_1(%arg0: i32, %arg1: i32, %arg2: i32) -> (i32, i32) {
    %c0_i32 = arith.constant 0 : i32
    %c0_i32_0 = arith.constant 0 : i32
    return %c0_i32, %arg1 : i32, i32
  }
  func.func @transform_2(%arg0: i32, %arg1: i32, %arg2: i32) -> (i32, i32) {
    %c0_i32 = arith.constant 0 : i32
    %c0_i32_0 = arith.constant 0 : i32
    return %c0_i32, %arg1 : i32, i32
  }
  func.func @transform_3(%arg0: i32, %arg1: i32, %arg2: i32) -> (i32, i32, i32) {
    %c0_i32 = arith.constant 0 : i32
    return %arg2, %arg0, %arg1 : i32, i32, i32
  }
  func.func @transform_4(%arg0: i32, %arg1: i32, %arg2: i32) -> (i32, i32) {
    %c0_i32 = arith.constant 0 : i32
    return %arg0, %arg1 : i32, i32
  }
  func.func @transform_5(%arg0: i32, %arg1: i32, %arg2: i32) -> (i32, i32) {
    %c0_i32 = arith.constant 0 : i32
    return %arg0, %arg1 : i32, i32
  }
}

</mosaic_0001>

<llo_original>
// kernel: tpu_custom_call.1
$region0: #{tpu_custom_call.1}
  #allocation0 [shape = 'u32[]', space=smem, size = 0x4, offset = 0x4, fixed_abs, tag = 'smem constant byte address 0x4 - core index']
  #allocation1 [shape = 'u32[144,128]{1,0:T(1,128)}', space=vmem, size = 0x12000, scoped, tag = 'internal scratch']
  #allocation2 [shape = 'f32[8,128]{1,0:T(8,128)}', space=vmem, size = 0x1000, scoped, tag = 'scratch operand']
  %s0 = inlined_call_operand.hbm [shape: f32[8,8,128], index: 0, kind: input, shape index: {}]
  %s1 = inlined_call_operand.vmem [shape: f32[1,128], index: 1, kind: input, shape index: {}]
  %s2 = inlined_call_operand.vmem [shape: f32[1,128], index: 2, kind: input, shape index: {}]
  %s3 = inlined_call_operand.hbm [shape: f32[8,8,128], index: 3, kind: output, shape index: {0}]
  %s4 = inlined_call_operand.hbm [shape: f32[8,128], index: 4, kind: output, shape index: {1}]
  %s5 = inlined_call_operand.hbm [shape: f32[8,128], index: 5, kind: output, shape index: {2}]
  %6 = xla_tuple %s3, %s4, %s5
  %s7 = sld [smem:[#allocation0]]
  $region46: #{tpu_custom_call.1} parent=0
    _
  %s9 = ssub.s32 1, %s7
  %s10 = scalar_select 0, %s9, %s7
  $region1: #{tpu_custom_call.1} parent=0
    #allocation3 [shape = 'u8[32768]{0}', space=vmem, size = 0x8000, scoped, tag = 'input window, operand 0, single buffered']
    #allocation4 [shape = 's32[1]{0}', space=sflag, size = 0x4, scoped, tag = 'scoped memory for tpu_custom_call.1']
    #allocation5 [shape = 's32[1]{0}', space=sflag, size = 0x4, scoped, tag = 'scoped memory for tpu_custom_call.1']
    #allocation6 [shape = 'u8[32768]{0}', space=vmem, size = 0x8000, scoped, tag = 'output window, operand 0, single buffered']
    #allocation7 [shape = 'u8[4096]{0}', space=vmem, size = 0x1000, scoped, tag = 'output window, operand 1, single buffered']
    #allocation8 [shape = 's32[1]{0}', space=sflag, size = 0x4, scoped, tag = 'scoped memory for tpu_custom_call.1']
    #allocation9 [shape = 'u8[4096]{0}', space=vmem, size = 0x1000, scoped, tag = 'output window, operand 2, single buffered']
    %11 = vsyncpa [#allocation4], 0
    %12 = vsyncpa [#allocation5], 0
    %13 = vsyncpa [#allocation8], 0
    // Predicated region
    $region2: #{tpu_custom_call.1} parent=1 // pred_check
      _
    $region3: #{tpu_custom_call.1} parent=1 // pred_check_branch
      %15 = sbr.rel (0) target = $region5
    $region4: #{tpu_custom_call.1} parent=1 // pred_region
      %s17 = ssub.s32 1024, 1024
      %18 = vsyncadd [#allocation4], %s17
      %s19 = sshll.u32 [#allocation3], 4
      %s20 = int_to_ptr.vmem [resolvable:$true] %s19
      %25 = dma.hbm_to_vmem [thread:$0]  %s0, 1024, %s20, [#allocation4], 128, 128, 8
    $region5: #{tpu_custom_call.1} parent=1 // pred_fallthru
      _
    // Predicated region
    $region6: #{tpu_custom_call.1} parent=1 // pred_check
      _
    $region7: #{tpu_custom_call.1} parent=1 // pred_check_branch
      %27 = sbr.rel (0) target = $region9
    $region8: #{tpu_custom_call.1} parent=1 // pred_region
      _
    $region9: #{tpu_custom_call.1} parent=1 // pred_fallthru
      _
    // Predicated region
    $region10: #{tpu_custom_call.1} parent=1 // pred_check
      _
    $region11: #{tpu_custom_call.1} parent=1 // pred_check_branch
      %29 = sbr.rel (0) target = $region13
    $region12: #{tpu_custom_call.1} parent=1 // pred_region
      _
    $region13: #{tpu_custom_call.1} parent=1 // pred_fallthru
      _
    // Predicated region
    $region14: #{tpu_custom_call.1} parent=1 // pred_check
      _
    $region15: #{tpu_custom_call.1} parent=1 // pred_check_branch
      %31 = sbr.rel (0) target = $region17
    $region16: #{tpu_custom_call.1} parent=1 // pred_region
      %32 = dma.done [#allocation4], 1024
    $region17: #{tpu_custom_call.1} parent=1 // pred_fallthru
      _
    %p33 = scmp.eq.s32.totalorder 0, 0
    // Predicated region
    $region18: #{tpu_custom_call.1} parent=1 // pred_check
      %p34 = pneg %p33
    $region19: #{tpu_custom_call.1} parent=1 // pred_check_branch
      %36 = sbr.rel (%p34) target = $region21
    $region20: #{tpu_custom_call.1} parent=1 // pred_region
      %37 = vst [vmem:[#allocation2] sm:$0xff] 0.0
      %38 = vst [vmem:[#allocation7] sm:$0xff] 0.0
      %39 = vst [vmem:[#allocation9] sm:$0xff] 1.6
    $region21: #{tpu_custom_call.1} parent=1 // pred_fallthru
      _
    %v40 = vld [vmem:[%s1] sm:$0x1]
    %v41 = vxor.u32 %v40, 2147483648
    %v42 = vmul.f32 %v41, 1.442695
    %v43 = vpow.pop %v42
    %v44 = vadd.f32 %v43, 1.0
    %v45 = vrcp.pop %v44
    %v46 = vmul.f32 1.0, %v45
    %v47 = vld [vmem:[%s2] sm:$0x1]
    %v48 = vxor.u32 %v47, 2147483648
    %v49 = vmul.f32 %v48, 1.442695
    %v50 = vpow.pop %v49
    %v51 = vadd.f32 %v50, 1.0
    %v52 = vrcp.pop %v51
    %v53 = vmul.f32 1.0, %v52
    %v54 = vsub.f32 1.0, %v53
    %v55 = vsub.f32 1.0, %v46
    %v56 = vld [vmem:[#allocation2] sm:$0xff]
    %v57 = vld [vmem:[#allocation7] sm:$0xff]
    %v58 = vld [vmem:[#allocation9] sm:$0xff]
    %v59 = vld [vmem:[#allocation3] sm:$0xff]
    %v61 = vlaneseq
    %v62 = vshrl.u32 %v61, 7
    %v63 = vsub.s32 0, %v62
    %v64 = vrot.slane %v53, %v63
    %v66 = vmul.f32 %v64, %v58
    %v68 = vlaneseq
    %v69 = vshrl.u32 %v68, 7
    %v70 = vsub.s32 0, %v69
    %v71 = vrot.slane %v54, %v70
    %v73 = vmul.f32 %v71, %v56
    %v74 = vadd.f32 %v66, %v73
    %v75 = vmul.f32 %v74, 0.184
    %v76 = vadd.f32 %v75, 1.6
    %v77 = vmul.f32 %v76, %v56
    %v79 = vlaneseq
    %v80 = vshrl.u32 %v79, 7
    %v81 = vsub.s32 0, %v80
    %v82 = vrot.slane %v46, %v81
    %v84 = vmul.f32 %v57, %v82
    %v86 = vlaneseq
    %v87 = vshrl.u32 %v86, 7
    %v88 = vsub.s32 0, %v87
    %v89 = vrot.slane %v55, %v88
    %v91 = vmul.f32 %v89, %v59
    %v92 = vadd.f32 %v84, %v91
    %v93 = vsub.f32 %v92, %v77
    %v94 = vsub.f32 %v93, %v76
    %vm95 = vcmp.gt.f32.partialorder %v94, 0.0
    %v96 = vsel %vm95, 1, 0
    %v97 = vcvt.s32.f32 %v96
    %98 = vst [vmem:[#allocation6] sm:$0xff] %v97
    %s99 = scalar_lea.vmem [#allocation3], 8
    %v100 = vld [vmem:[%s99] sm:$0xff]
    %v101 = vmul.f32 %v64, %v74
    %v102 = vmul.f32 %v71, %v97
    %v103 = vadd.f32 %v101, %v102
    %v104 = vmul.f32 %v103, 0.184
    %v105 = vadd.f32 %v104, 1.6
    %v106 = vmul.f32 %v105, %v97
    %v107 = vmul.f32 %v93, %v82
    %v108 = vmul.f32 %v89, %v100
    %v109 = vadd.f32 %v107, %v108
    %v110 = vsub.f32 %v109, %v106
    %v111 = vsub.f32 %v110, %v105
    %vm112 = vcmp.gt.f32.partialorder %v111, 0.0
    %v113 = vsel %vm112, 1, 0
    %v114 = vcvt.s32.f32 %v113
    %s115 = scalar_lea.vmem [#allocation6], 8
    %116 = vst [vmem:[%s115] sm:$0xff] %v114
    %s117 = scalar_lea.vmem [#allocation3], 16
    %v118 = vld [vmem:[%s117] sm:$0xff]
    %v119 = vmul.f32 %v64, %v103
    %v120 = vmul.f32 %v71, %v114
    %v121 = vadd.f32 %v119, %v120
    %v122 = vmul.f32 %v121, 0.184
    %v123 = vadd.f32 %v122, 1.6
    %v124 = vmul.f32 %v123, %v114
    %v125 = vmul.f32 %v110, %v82
    %v126 = vmul.f32 %v89, %v118
    %v127 = vadd.f32 %v125, %v126
    %v128 = vsub.f32 %v127, %v124
    %v129 = vsub.f32 %v128, %v123
    %vm130 = vcmp.gt.f32.partialorder %v129, 0.0
    %v131 = vsel %vm130, 1, 0
    %v132 = vcvt.s32.f32 %v131
    %s133 = scalar_lea.vmem [#allocation6], 16
    %134 = vst [vmem:[%s133] sm:$0xff] %v132
    %s135 = scalar_lea.vmem [#allocation3], 24
    %v136 = vld [vmem:[%s135] sm:$0xff]
    %v137 = vmul.f32 %v64, %v121
    %v138 = vmul.f32 %v71, %v132
    %v139 = vadd.f32 %v137, %v138
    %v140 = vmul.f32 %v139, 0.184
    %v141 = vadd.f32 %v140, 1.6
    %v142 = vmul.f32 %v141, %v132
    %v143 = vmul.f32 %v128, %v82
    %v144 = vmul.f32 %v89, %v136
    %v145 = vadd.f32 %v143, %v144
    %v146 = vsub.f32 %v145, %v142
    %v147 = vsub.f32 %v146, %v141
    %vm148 = vcmp.gt.f32.partialorder %v147, 0.0
    %v149 = vsel %vm148, 1, 0
    %v150 = vcvt.s32.f32 %v149
    %s151 = scalar_lea.vmem [#allocation6], 24
    %152 = vst [vmem:[%s151] sm:$0xff] %v150
    %s153 = scalar_lea.vmem [#allocation3], 32
    %v154 = vld [vmem:[%s153] sm:$0xff]
    %v155 = vmul.f32 %v64, %v139
    %v156 = vmul.f32 %v71, %v150
    %v157 = vadd.f32 %v155, %v156
    %v158 = vmul.f32 %v157, 0.184
    %v159 = vadd.f32 %v158, 1.6
    %v160 = vmul.f32 %v159, %v150
    %v161 = vmul.f32 %v146, %v82
    %v162 = vmul.f32 %v89, %v154
    %v163 = vadd.f32 %v161, %v162
    %v164 = vsub.f32 %v163, %v160
    %v165 = vsub.f32 %v164, %v159
    %vm166 = vcmp.gt.f32.partialorder %v165, 0.0
    %v167 = vsel %vm166, 1, 0
    %v168 = vcvt.s32.f32 %v167
    %s169 = scalar_lea.vmem [#allocation6], 32
    %170 = vst [vmem:[%s169] sm:$0xff] %v168
    %s171 = scalar_lea.vmem [#allocation3], 40
    %v172 = vld [vmem:[%s171] sm:$0xff]
    %v173 = vmul.f32 %v64, %v157
    %v174 = vmul.f32 %v71, %v168
    %v175 = vadd.f32 %v173, %v174
    %v176 = vmul.f32 %v175, 0.184
    %v177 = vadd.f32 %v176, 1.6
    %v178 = vmul.f32 %v177, %v168
    %v179 = vmul.f32 %v164, %v82
    %v180 = vmul.f32 %v89, %v172
    %v181 = vadd.f32 %v179, %v180
    %v182 = vsub.f32 %v181, %v178
    %v183 = vsub.f32 %v182, %v177
    %vm184 = vcmp.gt.f32.partialorder %v183, 0.0
    %v185 = vsel %vm184, 1, 0
    %v186 = vcvt.s32.f32 %v185
    %s187 = scalar_lea.vmem [#allocation6], 40
    %188 = vst [vmem:[%s187] sm:$0xff] %v186
    %s189 = scalar_lea.vmem [#allocation3], 48
    %v190 = vld [vmem:[%s189] sm:$0xff]
    %v191 = vmul.f32 %v64, %v175
    %v192 = vmul.f32 %v71, %v186
    %v193 = vadd.f32 %v191, %v192
    %v194 = vmul.f32 %v193, 0.184
    %v195 = vadd.f32 %v194, 1.6
    %v196 = vmul.f32 %v195, %v186
    %v197 = vmul.f32 %v182, %v82
    %v198 = vmul.f32 %v89, %v190
    %v199 = vadd.f32 %v197, %v198
    %v200 = vsub.f32 %v199, %v196
    %v201 = vsub.f32 %v200, %v195
    %vm202 = vcmp.gt.f32.partialorder %v201, 0.0
    %v203 = vsel %vm202, 1, 0
    %v204 = vcvt.s32.f32 %v203
    %s205 = scalar_lea.vmem [#allocation6], 48
    %206 = vst [vmem:[%s205] sm:$0xff] %v204
    %s207 = scalar_lea.vmem [#allocation3], 56
    %v208 = vld [vmem:[%s207] sm:$0xff]
    %v209 = vmul.f32 %v64, %v193
    %v210 = vmul.f32 %v71, %v204
    %v211 = vadd.f32 %v209, %v210
    %v212 = vmul.f32 %v211, 0.184
    %v213 = vadd.f32 %v212, 1.6
    %v214 = vmul.f32 %v213, %v204
    %v215 = vmul.f32 %v200, %v82
    %v216 = vmul.f32 %v89, %v208
    %v217 = vadd.f32 %v215, %v216
    %v218 = vsub.f32 %v217, %v214
    %v219 = vsub.f32 %v218, %v213
    %vm220 = vcmp.gt.f32.partialorder %v219, 0.0
    %v221 = vsel %vm220, 1, 0
    %v222 = vcvt.s32.f32 %v221
    %s223 = scalar_lea.vmem [#allocation6], 56
    %224 = vst [vmem:[%s223] sm:$0xff] %v222
    %225 = vst [vmem:[#allocation2] sm:$0xff] %v222
    %226 = vst [vmem:[#allocation7] sm:$0xff] %v218
    %227 = vst [vmem:[#allocation9] sm:$0xff] %v211
    // Predicated region
    $region22: #{tpu_custom_call.1} parent=1 // pred_check
      _
    $region23: #{tpu_custom_call.1} parent=1 // pred_check_branch
      %229 = sbr.rel (0) target = $region25
    $region24: #{tpu_custom_call.1} parent=1 // pred_region
      %s231 = ssub.s32 1024, 1024
      %232 = vsyncadd [#allocation5], %s231
      %s233 = sshll.u32 [#allocation6], 4
      %s234 = int_to_ptr.vmem [resolvable:$true] %s233
      %239 = dma.vmem_to_hbm [thread:$0]  %s234, 1024, %s3, [#allocation5], 128, 128, 8
    $region25: #{tpu_custom_call.1} parent=1 // pred_fallthru
      _
    // Predicated region
    $region26: #{tpu_custom_call.1} parent=1 // pred_check
      _
    $region27: #{tpu_custom_call.1} parent=1 // pred_check_branch
      %241 = sbr.rel (0) target = $region29
    $region28: #{tpu_custom_call.1} parent=1 // pred_region
      %s243 = ssub.s32 128, 128
      %244 = vsyncadd [#allocation8], %s243
      %s246 = sshll.u32 [#allocation7], 4
      %s247 = int_to_ptr.vmem [resolvable:$true] %s246
      %249 = dma.vmem_to_hbm [thread:$0]  %s247, 128, %s4, [#allocation8]
    $region29: #{tpu_custom_call.1} parent=1 // pred_fallthru
      _
    // Predicated region
    $region30: #{tpu_custom_call.1} parent=1 // pred_check
      _
    $region31: #{tpu_custom_call.1} parent=1 // pred_check_branch
      %251 = sbr.rel (0) target = $region33
    $region32: #{tpu_custom_call.1} parent=1 // pred_region
      %s253 = ssub.s32 128, 128
      %254 = vsyncadd [#allocation8], %s253
      %s256 = sshll.u32 [#allocation9], 4
      %s257 = int_to_ptr.vmem [resolvable:$true] %s256
      %259 = dma.vmem_to_hbm [thread:$0]  %s257, 128, %s5, [#allocation8]
    $region33: #{tpu_custom_call.1} parent=1 // pred_fallthru
      _
    // Predicated region
    $region34: #{tpu_custom_call.1} parent=1 // pred_check
      _
    $region35: #{tpu_custom_call.1} parent=1 // pred_check_branch
      %261 = sbr.rel (0) target = $region37
    $region36: #{tpu_custom_call.1} parent=1 // pred_region
      %262 = dma.done [#allocation5], 1024
    $region37: #{tpu_custom_call.1} parent=1 // pred_fallthru
      _
    // Predicated region
    $region38: #{tpu_custom_call.1} parent=1 // pred_check
      _
    $region39: #{tpu_custom_call.1} parent=1 // pred_check_branch
      %264 = sbr.rel (0) target = $region41
    $region40: #{tpu_custom_call.1} parent=1 // pred_region
      %265 = dma.done [#allocation8], 128
    $region41: #{tpu_custom_call.1} parent=1 // pred_fallthru
      _
    // Predicated region
    $region42: #{tpu_custom_call.1} parent=1 // pred_check
      _
    $region43: #{tpu_custom_call.1} parent=1 // pred_check_branch
      %267 = sbr.rel (0) target = $region45
    $region44: #{tpu_custom_call.1} parent=1 // pred_region
      %268 = dma.done [#allocation8], 128
    $region45: #{tpu_custom_call.1} parent=1 // pred_fallthru
      _
    %269 = vsyncpa [#allocation4], 1
    %270 = vsyncpa [#allocation5], 1
    %271 = vsyncpa [#allocation8], 1

</llo_original>
